<compile_context>
chip_gen: v7x
topology: tpu7x:2x2x1
jax: 0.10.0
libtpu: 0.0.40
codegen_flags: <defaults>
</compile_context>

<pallas_src>
import jax
import jax.numpy as jnp
from jax.experimental import pallas as pl
from jax.experimental.pallas import tpu as pltpu


def triplet_kernel(x1_ref, x23_ref, wimg_ref, bimg_ref, wtxt_ref, btxt_ref,
                   e1_ref, e23_ref, sims_ref, acc_ref):
    k = pl.program_id(0)
    nk = pl.num_programs(0)

    @pl.when(k == 0)
    def _init():
        acc_ref[...] = jnp.zeros_like(acc_ref)
        # Fused text branch: positive + negative rows share w_txt -> one matmul.
        e23 = jnp.dot(x23_ref[...], wtxt_ref[...],
                      preferred_element_type=jnp.float32) + btxt_ref[...]
        e23_ref[...] = jnp.maximum(e23, 0.0)

    # K-tiled image-branch accumulation (bf16 operands, f32 accumulate).
    acc_ref[...] += jnp.dot(x1_ref[...], wimg_ref[...],
                            preferred_element_type=jnp.float32)

    @pl.when(k == nk - 1)
    def _finalize():
        eps = 1e-8
        e1 = jnp.maximum(acc_ref[...] + bimg_ref[...], 0.0)
        e1_ref[...] = e1

        e23 = e23_ref[...]            # resident output block, written at k==0
        b = e1.shape[0]
        e2 = e23[:b]
        e3 = e23[b:]

        # Hoisted anchor norm; rsqrt runs on the (otherwise idle) EUP slot.
        inv1 = jax.lax.rsqrt(jnp.sum(e1 * e1, axis=-1, keepdims=True) + eps)
        inv2 = jax.lax.rsqrt(jnp.sum(e2 * e2, axis=-1, keepdims=True) + eps)
        inv3 = jax.lax.rsqrt(jnp.sum(e3 * e3, axis=-1, keepdims=True) + eps)
        sp = jnp.sum(e1 * e2, axis=-1, keepdims=True) * (inv1 * inv2)
        sn = jnp.sum(e1 * e3, axis=-1, keepdims=True) * (inv1 * inv3)

        # Single (B, 2) similarity output: col 0 = sim_pos, col 1 = sim_neg.
        col = jax.lax.broadcasted_iota(jnp.int32, (b, 2), 1)
        sims_ref[...] = jnp.where(col == 0, sp, sn)


def triplet_forward(x1_nchw, x2, x3, w_img, b_img, w_txt, b_txt, *, tk=256):
    B = x1_nchw.shape[0]
    x1 = x1_nchw.reshape(B, -1)                 # glue: NCHW -> [B, C*H*W]
    K_img = x1.shape[1]
    K_txt = x2.shape[1]
    D = w_img.shape[1]

    # Pad batch to the f32 sublane tile (8 rows).
    B_pad = max(8, ((B + 7) // 8) * 8)

    def pad_rows(a, n):
        return jnp.pad(a, ((0, n - a.shape[0]), (0, 0)))

    # bf16 matmul operands (biases / accumulation / elementwise stay f32).
    x1p = pad_rows(x1, B_pad).astype(jnp.bfloat16)
    x23 = jnp.concatenate(
        [pad_rows(x2, B_pad), pad_rows(x3, B_pad)], axis=0).astype(jnp.bfloat16)
    w_img_b = w_img.astype(jnp.bfloat16)
    w_txt_b = w_txt.astype(jnp.bfloat16)
    b_img_f = b_img.astype(jnp.float32)
    b_txt_f = b_txt.astype(jnp.float32)

    tk = min(tk, K_img)
    assert K_img % tk == 0, "K_img must be divisible by the K tile"
    nk = K_img // tk

    grid_spec = pltpu.PrefetchScalarGridSpec(
        num_scalar_prefetch=0,
        grid=(nk,),
        in_specs=[
            pl.BlockSpec((B_pad, tk), lambda k: (0, k)),        # x1 (K-tiled)
            pl.BlockSpec((2 * B_pad, K_txt), lambda k: (0, 0)),  # x2|x3 fused
            pl.BlockSpec((tk, D), lambda k: (k, 0)),             # w_img (K-tiled)
            pl.BlockSpec((1, D), lambda k: (0, 0)),              # b_img
            pl.BlockSpec((K_txt, D), lambda k: (0, 0)),          # w_txt
            pl.BlockSpec((1, D), lambda k: (0, 0)),              # b_txt
        ],
        out_specs=[
            pl.BlockSpec((B_pad, D), lambda k: (0, 0)),          # e1
            pl.BlockSpec((2 * B_pad, D), lambda k: (0, 0)),      # e2|e3
            pl.BlockSpec((B_pad, 2), lambda k: (0, 0)),          # [sim_pos, sim_neg]
        ],
        scratch_shapes=[pltpu.VMEM((B_pad, D), jnp.float32)],    # image acc
    )

    e1, e23, sims = pl.pallas_call(
        triplet_kernel,
        out_shape=(
            jax.ShapeDtypeStruct((B_pad, D), jnp.float32),
            jax.ShapeDtypeStruct((2 * B_pad, D), jnp.float32),
            jax.ShapeDtypeStruct((B_pad, 2), jnp.float32),
        ),
        grid_spec=grid_spec,
        compiler_params=pltpu.CompilerParams(
            dimension_semantics=("arbitrary",),  # K is a reduction axis
        ),
    )(x1p, x23, w_img_b, b_img_f, w_txt_b, b_txt_f)

    e2 = e23[:B_pad][:B]
    e3 = e23[B_pad:][:B]
    return e1[:B], e2, e3, sims[:B, 0:1], sims[:B, 1:2]


if __name__ == "__main__":
    key = jax.random.PRNGKey(0)
    k1, k2, k3, k4, k5, k6, k7 = jax.random.split(key, 7)

    # Small shapes consistent with the module: image NCHW, text feature rows.
    B, C, H, W = 2, 4, 16, 16
    T = 32           # text feature dim
    D = 128          # shared embedding dim

    x1 = jax.random.normal(k1, (B, C, H, W), dtype=jnp.float32)   # anchor image
    x2 = jax.random.normal(k2, (B, T), dtype=jnp.float32)         # positive text
    x3 = jax.random.normal(k3, (B, T), dtype=jnp.float32)         # negative text

    K_img = C * H * W
    w_img = jax.random.normal(k4, (K_img, D), dtype=jnp.float32) * (1.0 / jnp.sqrt(K_img))
    b_img = jax.random.normal(k5, (1, D), dtype=jnp.float32) * 0.01
    w_txt = jax.random.normal(k6, (T, D), dtype=jnp.float32) * (1.0 / jnp.sqrt(T))
    b_txt = jax.random.normal(k7, (1, D), dtype=jnp.float32) * 0.01

    e1, e2, e3, sim_pos, sim_neg = triplet_forward(
        x1, x2, x3, w_img, b_img, w_txt, b_txt)
    jax.block_until_ready((e1, e2, e3, sim_pos, sim_neg))

    # Correctness check against plain-JAX reference using the same bf16
    # matmul operands / f32 accumulation as the kernel.
    def ref():
        x1f = x1.reshape(B, -1)
        a = jnp.maximum(
            jnp.dot(x1f.astype(jnp.bfloat16), w_img.astype(jnp.bfloat16),
                    preferred_element_type=jnp.float32) + b_img, 0.0)
        p = jnp.maximum(
            jnp.dot(x2.astype(jnp.bfloat16), w_txt.astype(jnp.bfloat16),
                    preferred_element_type=jnp.float32) + b_txt, 0.0)
        n = jnp.maximum(
            jnp.dot(x3.astype(jnp.bfloat16), w_txt.astype(jnp.bfloat16),
                    preferred_element_type=jnp.float32) + b_txt, 0.0)

        def cos(u, v):
            return (jnp.sum(u * v, -1, keepdims=True) /
                    (jnp.sqrt(jnp.sum(u * u, -1, keepdims=True) + 1e-8) *
                     jnp.sqrt(jnp.sum(v * v, -1, keepdims=True) + 1e-8)))
        return a, p, n, cos(a, p), cos(a, n)

    r1, r2, r3, rp, rn = ref()
    assert jnp.allclose(e1, r1, atol=1e-2, rtol=1e-2)
    assert jnp.allclose(e2, r2, atol=1e-2, rtol=1e-2)
    assert jnp.allclose(e3, r3, atol=1e-2, rtol=1e-2)
    assert jnp.allclose(sim_pos, rp, atol=1e-2, rtol=1e-2)
    assert jnp.allclose(sim_neg, rn, atol=1e-2, rtol=1e-2)

    print("KERNEL_OK")
</pallas_src>

<mosaic_0001>
module attributes {stable_mosaic.version = 11 : i64} {
  func.func @triplet_kernel(%arg0: i32, %arg1: memref<8x256xbf16, #tpu.memory_space<vmem>>, %arg2: memref<16x32xbf16, #tpu.memory_space<vmem>>, %arg3: memref<256x128xbf16, #tpu.memory_space<vmem>>, %arg4: memref<1x128xf32, #tpu.memory_space<vmem>>, %arg5: memref<32x128xbf16, #tpu.memory_space<vmem>>, %arg6: memref<1x128xf32, #tpu.memory_space<vmem>>, %arg7: memref<8x128xf32, #tpu.memory_space<vmem>>, %arg8: memref<16x128xf32, #tpu.memory_space<vmem>>, %arg9: memref<8x2xf32, #tpu.memory_space<vmem>>, %arg10: memref<8x128xf32, #tpu.memory_space<vmem>>) attributes {dimension_semantics = [#tpu.dimension_semantics<arbitrary>], iteration_bounds = array<i64: 4>, scalar_prefetch = 0 : i64, scratch_operands = 1 : i64, tpu.core_type = #tpu.core_type<tc>, window_params = [{transform_indices = @transform_0, window_bounds = array<i64: 8, 256>}, {pipeline_mode = #tpu.pipeline_mode<synchronous>, transform_indices = @transform_1, window_bounds = array<i64: 16, 32>}, {transform_indices = @transform_2, window_bounds = array<i64: 256, 128>}, {pipeline_mode = #tpu.pipeline_mode<synchronous>, transform_indices = @transform_3, window_bounds = array<i64: 1, 128>}, {pipeline_mode = #tpu.pipeline_mode<synchronous>, transform_indices = @transform_4, window_bounds = array<i64: 32, 128>}, {pipeline_mode = #tpu.pipeline_mode<synchronous>, transform_indices = @transform_5, window_bounds = array<i64: 1, 128>}, {pipeline_mode = #tpu.pipeline_mode<synchronous>, transform_indices = @transform_6, window_bounds = array<i64: 8, 128>}, {pipeline_mode = #tpu.pipeline_mode<synchronous>, transform_indices = @transform_7, window_bounds = array<i64: 16, 128>}, {pipeline_mode = #tpu.pipeline_mode<synchronous>, transform_indices = @transform_8, window_bounds = array<i64: 8, 2>}]} {
    %c0_i32 = arith.constant 0 : i32
    %0 = arith.cmpi eq, %arg0, %c0_i32 : i32
    %1 = arith.extui %0 : i1 to i32
    %c0_i32_0 = arith.constant 0 : i32
    %2 = arith.cmpi ne, %1, %c0_i32_0 : i32
    scf.if %2 {
      %cst_9 = arith.constant 0.000000e+00 : f32
      %12 = vector.broadcast %cst_9 : f32 to vector<8x128xf32>
      %c0_10 = arith.constant 0 : index
      %c0_11 = arith.constant 0 : index
      %13 = vector.load %arg10[%c0_10, %c0_11] : memref<8x128xf32, #tpu.memory_space<vmem>>, vector<8x128xf32>
      tpu.vector_store %arg10[%c0_10, %c0_11], %12 {strides = array<i32>} : memref<8x128xf32, #tpu.memory_space<vmem>>, vector<8x128xf32>,
      %c0_12 = arith.constant 0 : index
      %c0_13 = arith.constant 0 : index
      %14 = vector.load %arg2[%c0_12, %c0_13] : memref<16x32xbf16, #tpu.memory_space<vmem>>, vector<16x32xbf16>
      %c0_14 = arith.constant 0 : index
      %c0_15 = arith.constant 0 : index
      %15 = vector.load %arg5[%c0_14, %c0_15] : memref<32x128xbf16, #tpu.memory_space<vmem>>, vector<32x128xbf16>
      %cst_16 = arith.constant dense<0.000000e+00> : vector<16x128xf32>
      %16 = tpu.matmul %14, %15, %cst_16 {dimension_numbers = #tpu.dot_dimension_numbers<[1], [0], [0], [1], [0, 0, 1, 1], [], []>} : vector<16x32xbf16>, vector<32x128xbf16>, vector<16x128xf32> -> vector<16x128xf32>
      %c0_17 = arith.constant 0 : index
      %c0_18 = arith.constant 0 : index
      %17 = vector.load %arg6[%c0_17, %c0_18] : memref<1x128xf32, #tpu.memory_space<vmem>>, vector<1x128xf32>
      %18 = vector.broadcast %17 : vector<1x128xf32> to vector<16x128xf32>
      %19 = arith.addf %16, %18 : vector<16x128xf32>
      %cst_19 = arith.constant 0.000000e+00 : f32
      %20 = vector.broadcast %cst_19 : f32 to vector<16x128xf32>
      %21 = arith.maximumf %19, %20 : vector<16x128xf32>
      %c0_20 = arith.constant 0 : index
      %c0_21 = arith.constant 0 : index
      %22 = vector.load %arg8[%c0_20, %c0_21] : memref<16x128xf32, #tpu.memory_space<vmem>>, vector<16x128xf32>
      tpu.vector_store %arg8[%c0_20, %c0_21], %21 {strides = array<i32>} : memref<16x128xf32, #tpu.memory_space<vmem>>, vector<16x128xf32>,
    } else {
    }
    %c0 = arith.constant 0 : index
    %c0_1 = arith.constant 0 : index
    %3 = vector.load %arg10[%c0, %c0_1] : memref<8x128xf32, #tpu.memory_space<vmem>>, vector<8x128xf32>
    %c0_2 = arith.constant 0 : index
    %c0_3 = arith.constant 0 : index
    %4 = vector.load %arg1[%c0_2, %c0_3] : memref<8x256xbf16, #tpu.memory_space<vmem>>, vector<8x256xbf16>
    %c0_4 = arith.constant 0 : index
    %c0_5 = arith.constant 0 : index
    %5 = vector.load %arg3[%c0_4, %c0_5] : memref<256x128xbf16, #tpu.memory_space<vmem>>, vector<256x128xbf16>
    %cst = arith.constant dense<0.000000e+00> : vector<8x128xf32>
    %6 = tpu.matmul %4, %5, %cst {dimension_numbers = #tpu.dot_dimension_numbers<[1], [0], [0], [1], [0, 0, 1, 1], [], []>} : vector<8x256xbf16>, vector<256x128xbf16>, vector<8x128xf32> -> vector<8x128xf32>
    %7 = arith.addf %3, %6 : vector<8x128xf32>
    %c0_6 = arith.constant 0 : index
    %c0_7 = arith.constant 0 : index
    %8 = vector.load %arg10[%c0_6, %c0_7] : memref<8x128xf32, #tpu.memory_space<vmem>>, vector<8x128xf32>
    tpu.vector_store %arg10[%c0_6, %c0_7], %7 {strides = array<i32>} : memref<8x128xf32, #tpu.memory_space<vmem>>, vector<8x128xf32>,
    %c3_i32 = arith.constant 3 : i32
    %9 = arith.cmpi eq, %arg0, %c3_i32 : i32
    %10 = arith.extui %9 : i1 to i32
    %c0_i32_8 = arith.constant 0 : i32
    %11 = arith.cmpi ne, %10, %c0_i32_8 : i32
    scf.if %11 {
      %c0_9 = arith.constant 0 : index
      %c0_10 = arith.constant 0 : index
      %12 = vector.load %arg10[%c0_9, %c0_10] : memref<8x128xf32, #tpu.memory_space<vmem>>, vector<8x128xf32>
      %c0_11 = arith.constant 0 : index
      %c0_12 = arith.constant 0 : index
      %13 = vector.load %arg4[%c0_11, %c0_12] : memref<1x128xf32, #tpu.memory_space<vmem>>, vector<1x128xf32>
      %14 = vector.broadcast %13 : vector<1x128xf32> to vector<8x128xf32>
      %15 = arith.addf %12, %14 : vector<8x128xf32>
      %cst_13 = arith.constant 0.000000e+00 : f32
      %16 = vector.broadcast %cst_13 : f32 to vector<8x128xf32>
      %17 = arith.maximumf %15, %16 : vector<8x128xf32>
      %c0_14 = arith.constant 0 : index
      %c0_15 = arith.constant 0 : index
      %18 = vector.load %arg7[%c0_14, %c0_15] : memref<8x128xf32, #tpu.memory_space<vmem>>, vector<8x128xf32>
      tpu.vector_store %arg7[%c0_14, %c0_15], %17 {strides = array<i32>} : memref<8x128xf32, #tpu.memory_space<vmem>>, vector<8x128xf32>,
      %c0_16 = arith.constant 0 : index
      %c0_17 = arith.constant 0 : index
      %19 = vector.load %arg8[%c0_16, %c0_17] : memref<16x128xf32, #tpu.memory_space<vmem>>, vector<16x128xf32>
      %20 = vector.extract_strided_slice %19 {offsets = [0, 0], sizes = [8, 128], strides = [1, 1]} : vector<16x128xf32> to vector<8x128xf32>
      %21 = vector.extract_strided_slice %19 {offsets = [8, 0], sizes = [8, 128], strides = [1, 1]} : vector<16x128xf32> to vector<8x128xf32>
      %22 = arith.mulf %17, %17 : vector<8x128xf32>
      %cst_18 = arith.constant dense<0.000000e+00> : vector<8xf32>
      %23 = vector.multi_reduction <add>, %22, %cst_18 [1] : vector<8x128xf32> to vector<8xf32>
      %24 = vector.shape_cast %23 : vector<8xf32> to vector<8x1xf32>
      %cst_19 = arith.constant 9.99999993E-9 : f32
      %25 = vector.broadcast %cst_19 : f32 to vector<8x1xf32>
      %26 = arith.addf %24, %25 : vector<8x1xf32>
      %27 = math.rsqrt %26 : vector<8x1xf32>
      %28 = arith.mulf %20, %20 : vector<8x128xf32>
      %cst_20 = arith.constant dense<0.000000e+00> : vector<8xf32>
      %29 = vector.multi_reduction <add>, %28, %cst_20 [1] : vector<8x128xf32> to vector<8xf32>
      %30 = vector.shape_cast %29 : vector<8xf32> to vector<8x1xf32>
      %cst_21 = arith.constant 9.99999993E-9 : f32
      %31 = vector.broadcast %cst_21 : f32 to vector<8x1xf32>
      %32 = arith.addf %30, %31 : vector<8x1xf32>
      %33 = math.rsqrt %32 : vector<8x1xf32>
      %34 = arith.mulf %21, %21 : vector<8x128xf32>
      %cst_22 = arith.constant dense<0.000000e+00> : vector<8xf32>
      %35 = vector.multi_reduction <add>, %34, %cst_22 [1] : vector<8x128xf32> to vector<8xf32>
      %36 = vector.shape_cast %35 : vector<8xf32> to vector<8x1xf32>
      %cst_23 = arith.constant 9.99999993E-9 : f32
      %37 = vector.broadcast %cst_23 : f32 to vector<8x1xf32>
      %38 = arith.addf %36, %37 : vector<8x1xf32>
      %39 = math.rsqrt %38 : vector<8x1xf32>
      %40 = arith.mulf %17, %20 : vector<8x128xf32>
      %cst_24 = arith.constant dense<0.000000e+00> : vector<8xf32>
      %41 = vector.multi_reduction <add>, %40, %cst_24 [1] : vector<8x128xf32> to vector<8xf32>
      %42 = vector.shape_cast %41 : vector<8xf32> to vector<8x1xf32>
      %43 = arith.mulf %27, %33 : vector<8x1xf32>
      %44 = arith.mulf %42, %43 : vector<8x1xf32>
      %45 = arith.mulf %17, %21 : vector<8x128xf32>
      %cst_25 = arith.constant dense<0.000000e+00> : vector<8xf32>
      %46 = vector.multi_reduction <add>, %45, %cst_25 [1] : vector<8x128xf32> to vector<8xf32>
      %47 = vector.shape_cast %46 : vector<8xf32> to vector<8x1xf32>
      %48 = arith.mulf %27, %39 : vector<8x1xf32>
      %49 = arith.mulf %47, %48 : vector<8x1xf32>
      %50 = tpu.iota {dimensions = array<i32: 1>} : vector<8x2xi32>
      %c0_i32_26 = arith.constant 0 : i32
      %51 = vector.broadcast %c0_i32_26 : i32 to vector<8x2xi32>
      %52 = arith.cmpi eq, %50, %51 : vector<8x2xi32>
      %53 = vector.shape_cast %44 : vector<8x1xf32> to vector<8x1xf32>
      %54 = vector.broadcast %53 : vector<8x1xf32> to vector<8x2xf32>
      %55 = vector.shape_cast %49 : vector<8x1xf32> to vector<8x1xf32>
      %56 = vector.broadcast %55 : vector<8x1xf32> to vector<8x2xf32>
      %57 = arith.select %52, %54, %56 : vector<8x2xi1>, vector<8x2xf32>
      %c0_27 = arith.constant 0 : index
      %c0_28 = arith.constant 0 : index
      %58 = vector.load %arg9[%c0_27, %c0_28] : memref<8x2xf32, #tpu.memory_space<vmem>>, vector<8x2xf32>
      tpu.vector_store %arg9[%c0_27, %c0_28], %57 {strides = array<i32>} : memref<8x2xf32, #tpu.memory_space<vmem>>, vector<8x2xf32>,
    } else {
    }
    return
  }
  func.func @transform_0(%arg0: i32) -> (i32, i32) {
    %c0_i32 = arith.constant 0 : i32
    %c0_i32_0 = arith.constant 0 : i32
    return %c0_i32, %arg0 : i32, i32
  }
  func.func @transform_1(%arg0: i32) -> (i32, i32) {
    %c0_i32 = arith.constant 0 : i32
    %c0_i32_0 = arith.constant 0 : i32
    %c0_i32_1 = arith.constant 0 : i32
    return %c0_i32, %c0_i32_0 : i32, i32
  }
  func.func @transform_2(%arg0: i32) -> (i32, i32) {
    %c0_i32 = arith.constant 0 : i32
    %c0_i32_0 = arith.constant 0 : i32
    return %arg0, %c0_i32 : i32, i32
  }
  func.func @transform_3(%arg0: i32) -> (i32, i32) {
    %c0_i32 = arith.constant 0 : i32
    %c0_i32_0 = arith.constant 0 : i32
    %c0_i32_1 = arith.constant 0 : i32
    return %c0_i32, %c0_i32_0 : i32, i32
  }
  func.func @transform_4(%arg0: i32) -> (i32, i32) {
    %c0_i32 = arith.constant 0 : i32
    %c0_i32_0 = arith.constant 0 : i32
    %c0_i32_1 = arith.constant 0 : i32
    return %c0_i32, %c0_i32_0 : i32, i32
  }
  func.func @transform_5(%arg0: i32) -> (i32, i32) {
    %c0_i32 = arith.constant 0 : i32
    %c0_i32_0 = arith.constant 0 : i32
    %c0_i32_1 = arith.constant 0 : i32
    return %c0_i32, %c0_i32_0 : i32, i32
  }
  func.func @transform_6(%arg0: i32) -> (i32, i32) {
    %c0_i32 = arith.constant 0 : i32
    %c0_i32_0 = arith.constant 0 : i32
    %c0_i32_1 = arith.constant 0 : i32
    return %c0_i32, %c0_i32_0 : i32, i32
  }
  func.func @transform_7(%arg0: i32) -> (i32, i32) {
    %c0_i32 = arith.constant 0 : i32
    %c0_i32_0 = arith.constant 0 : i32
    %c0_i32_1 = arith.constant 0 : i32
    return %c0_i32, %c0_i32_0 : i32, i32
  }
  func.func @transform_8(%arg0: i32) -> (i32, i32) {
    %c0_i32 = arith.constant 0 : i32
    %c0_i32_0 = arith.constant 0 : i32
    %c0_i32_1 = arith.constant 0 : i32
    return %c0_i32, %c0_i32_0 : i32, i32
  }
}

</mosaic_0001>

<llo_original>
// kernel: tpu_custom_call.1
$region0: #{tpu_custom_call.1}
  #allocation0 [shape = 'u32[]', space=smem, size = 0x4, offset = 0x4, fixed_abs, tag = 'smem constant byte address 0x4 - core index']
  #allocation1 [shape = 'u32[144,128]{1,0:T(1,128)}', space=vmem, size = 0x12000, scoped, tag = 'internal scratch']
  #allocation2 [shape = 'f32[8,128]{1,0:T(8,128)}', space=vmem, size = 0x1000, scoped, tag = 'scratch operand']
  %s0 = inlined_call_operand.hbm [shape: bf16[8,1024], index: 0, kind: input, shape index: {}]
  %s1 = inlined_call_operand.hbm [shape: bf16[16,32], index: 1, kind: input, shape index: {}]
  %s2 = inlined_call_operand.hbm [shape: bf16[1024,128], index: 2, kind: input, shape index: {}]
  %s3 = inlined_call_operand.vmem [shape: f32[1,128], index: 3, kind: input, shape index: {}]
  %s4 = inlined_call_operand.hbm [shape: bf16[32,128], index: 4, kind: input, shape index: {}]
  %s5 = inlined_call_operand.vmem [shape: f32[1,128], index: 5, kind: input, shape index: {}]
  %s6 = inlined_call_operand.hbm [shape: f32[8,128], index: 6, kind: output, shape index: {0}]
  %s7 = inlined_call_operand.hbm [shape: f32[16,128], index: 7, kind: output, shape index: {1}]
  %s8 = inlined_call_operand.vmem [shape: f32[8,2], index: 8, kind: output, shape index: {2}]
  %9 = xla_tuple %s6, %s7, %s8
  %s10 = sld [smem:[#allocation0]]
  $region97: #{tpu_custom_call.1} parent=0
    _
  %s12 = ssub.s32 1, %s10
  %s13 = scalar_select 0, %s12, %s10
  $region1: #{tpu_custom_call.1} parent=0
    #allocation3 [shape = 'u8[8192]{0}', space=vmem, size = 0x2000, scoped, tag = 'input window, operand 0']
    #allocation4 [shape = 's32[2]{0}', space=sflag, size = 0x8, scoped, tag = 'scoped memory for tpu_custom_call.1']
    #allocation5 [shape = 's32[2]{0}', space=sflag, size = 0x8, scoped, tag = 'scoped memory for tpu_custom_call.1']
    #allocation6 [shape = 'u8[4096]{0}', space=vmem, size = 0x1000, scoped, tag = 'input window, operand 1, single buffered']
    #allocation7 [shape = 's32[1]{0}', space=sflag, size = 0x4, scoped, tag = 'scoped memory for tpu_custom_call.1']
    #allocation8 [shape = 'u8[131072]{0}', space=vmem, size = 0x20000, scoped, tag = 'input window, operand 2']
    #allocation9 [shape = 'u8[8192]{0}', space=vmem, size = 0x2000, scoped, tag = 'input window, operand 4, single buffered']
    #allocation10 [shape = 'u8[4096]{0}', space=vmem, size = 0x1000, scoped, tag = 'output window, operand 0, single buffered']
    #allocation11 [shape = 'u8[8192]{0}', space=vmem, size = 0x2000, scoped, tag = 'output window, operand 1, single buffered']
    #allocation12 [shape = 's32[1]{0}', space=sflag, size = 0x4, scoped, tag = 'scoped memory for tpu_custom_call.1']
    %14 = vsyncpa [#allocation4], 0
    %s15 = scalar_lea.sflag [#allocation4], 1
    %16 = vsyncpa %s15, 0
    %17 = vsyncpa [#allocation7], 0
    %18 = vsyncpa [#allocation5], 0
    %19 = vsyncpa [#allocation12], 0
    loop: start=0, step=1, limit=6
    $region2: #{tpu_custom_call.1} parent=1 // loop_pre_header
      _
    $region3: #{tpu_custom_call.1} parent=1 // loop_header
      %s21 = sphi 0, %s25
      %p22 = scmp.ge.s32.totalorder %s21, 6
      %s31 = sphi 0, %s33
      %s34 = sphi 0, %s31
      %s35 = sphi 0, %s34
      %s51 = sphi 0, %s35
      %s55 = sphi 0, %s55
      %s57 = sphi 0, %s55
      %s58 = sphi 0, %s57
      %s72 = sphi 0, %s58
      %s78 = sphi 0, %s80
      %s81 = sphi 0, %s78
      %s82 = sphi 0, %s81
      %s98 = sphi 0, %s82
      %s102 = sphi 0, %s102
      %s104 = sphi 0, %s102
      %s105 = sphi 0, %s104
      %s119 = sphi 0, %s105
      %s123 = sphi 0, %s123
      %s125 = sphi 0, %s123
      %s126 = sphi 0, %s125
      %s140 = sphi 0, %s126
      %s144 = sphi 0, %s144
      %s146 = sphi 0, %s144
      %s147 = sphi 0, %s146
      %s161 = sphi 0, %s147
      %s165 = sphi 0, %s165
      %s167 = sphi 0, %s165
      %s168 = sphi 0, %s167
      %s182 = sphi 0, %s168
      %s186 = sphi 0, %s186
      %s188 = sphi 0, %s186
      %s189 = sphi 0, %s188
      %s203 = sphi 0, %s189
      %s207 = sphi 0, %s207
      %s209 = sphi 0, %s207
      %s210 = sphi 0, %s209
      %s224 = sphi 0, %s210
    $region4: #{tpu_custom_call.1} parent=1 // loop_header_branch
      %24 = sbr.rel (%p22) target = $region8
    $region5: #{tpu_custom_call.1} parent=1 // loop_body
      %s26 = ssub.s32 %s21, 1
      %s27 = ssub.s32 %s21, 2
      %s28 = sadd.s32 %s21, 1
      %s29 = ssub.s32 %s21, %s28
      %p30 = scmp.eq.s32.totalorder %s29, 0
      %s32 = sadd.s32 %s31, 1
      %s33 = scalar_select %p30, %s31, %s32
      %p36 = pneg %p30
      %p37 = scmp.eq.s32.totalorder %s21, 3
      %p38 = por %p36, %p37
      %p39 = scmp.ne.s32.totalorder %s31, %s34
      %p40 = scmp.eq.s32.totalorder %s21, 0
      %p41 = por %p39, %p40
      %p42 = scmp.ne.s32.totalorder %s31, %s34
      %p43 = scmp.eq.s32.totalorder %s26, 3
      %p44 = por %p42, %p43
      %p45 = scmp.ne.s32.totalorder %s34, %s35
      %p46 = scmp.eq.s32.totalorder %s26, 0
      %p47 = por %p45, %p46
      %p48 = scmp.ne.s32.totalorder %s34, %s35
      %p49 = scmp.eq.s32.totalorder %s27, 3
      %p50 = por %p48, %p49
      %p52 = scmp.ne.s32.totalorder %s35, %s51
      %p53 = scmp.eq.s32.totalorder %s27, 0
      %p54 = por %p52, %p53
      %s56 = sadd.s32 %s55, 1
      %p59 = scmp.eq.s32.totalorder %s21, 3
      %p60 = scmp.ne.s32.totalorder %s55, %s57
      %p61 = scmp.eq.s32.totalorder %s21, 0
      %p62 = por %p60, %p61
      %p63 = scmp.ne.s32.totalorder %s55, %s57
      %p64 = scmp.eq.s32.totalorder %s26, 3
      %p65 = por %p63, %p64
      %p66 = scmp.ne.s32.totalorder %s57, %s58
      %p67 = scmp.eq.s32.totalorder %s26, 0
      %p68 = por %p66, %p67
      %p69 = scmp.ne.s32.totalorder %s57, %s58
      %p70 = scmp.eq.s32.totalorder %s27, 3
      %p71 = por %p69, %p70
      %p73 = scmp.ne.s32.totalorder %s58, %s72
      %p74 = scmp.eq.s32.totalorder %s27, 0
      %p75 = por %p73, %p74
      %s76 = ssub.s32 %s21, %s28
      %p77 = scmp.eq.s32.totalorder %s76, 0
      %s79 = sadd.s32 %s78, 1
      %s80 = scalar_select %p77, %s78, %s79
      %p83 = pneg %p77
      %p84 = scmp.eq.s32.totalorder %s21, 3
      %p85 = por %p83, %p84
      %p86 = scmp.ne.s32.totalorder %s78, %s81
      %p87 = scmp.eq.s32.totalorder %s21, 0
      %p88 = por %p86, %p87
      %p89 = scmp.ne.s32.totalorder %s78, %s81
      %p90 = scmp.eq.s32.totalorder %s26, 3
      %p91 = por %p89, %p90
      %p92 = scmp.ne.s32.totalorder %s81, %s82
      %p93 = scmp.eq.s32.totalorder %s26, 0
      %p94 = por %p92, %p93
      %p95 = scmp.ne.s32.totalorder %s81, %s82
      %p96 = scmp.eq.s32.totalorder %s27, 3
      %p97 = por %p95, %p96
      %p99 = scmp.ne.s32.totalorder %s82, %s98
      %p100 = scmp.eq.s32.totalorder %s27, 0
      %p101 = por %p99, %p100
      %s103 = sadd.s32 %s102, 1
      %p106 = scmp.eq.s32.totalorder %s21, 3
      %p107 = scmp.ne.s32.totalorder %s102, %s104
      %p108 = scmp.eq.s32.totalorder %s21, 0
      %p109 = por %p107, %p108
      %p110 = scmp.ne.s32.totalorder %s102, %s104
      %p111 = scmp.eq.s32.totalorder %s26, 3
      %p112 = por %p110, %p111
      %p113 = scmp.ne.s32.totalorder %s104, %s105
      %p114 = scmp.eq.s32.totalorder %s26, 0
      %p115 = por %p113, %p114
      %p116 = scmp.ne.s32.totalorder %s104, %s105
      %p117 = scmp.eq.s32.totalorder %s27, 3
      %p118 = por %p116, %p117
      %p120 = scmp.ne.s32.totalorder %s105, %s119
      %p121 = scmp.eq.s32.totalorder %s27, 0
      %p122 = por %p120, %p121
      %s124 = sadd.s32 %s123, 1
      %p127 = scmp.eq.s32.totalorder %s21, 3
      %p128 = scmp.ne.s32.totalorder %s123, %s125
      %p129 = scmp.eq.s32.totalorder %s21, 0
      %p130 = por %p128, %p129
      %p131 = scmp.ne.s32.totalorder %s123, %s125
      %p132 = scmp.eq.s32.totalorder %s26, 3
      %p133 = por %p131, %p132
      %p134 = scmp.ne.s32.totalorder %s125, %s126
      %p135 = scmp.eq.s32.totalorder %s26, 0
      %p136 = por %p134, %p135
      %p137 = scmp.ne.s32.totalorder %s125, %s126
      %p138 = scmp.eq.s32.totalorder %s27, 3
      %p139 = por %p137, %p138
      %p141 = scmp.ne.s32.totalorder %s126, %s140
      %p142 = scmp.eq.s32.totalorder %s27, 0
      %p143 = por %p141, %p142
      %s145 = sadd.s32 %s144, 1
      %p148 = scmp.eq.s32.totalorder %s21, 3
      %p149 = scmp.ne.s32.totalorder %s144, %s146
      %p150 = scmp.eq.s32.totalorder %s21, 0
      %p151 = por %p149, %p150
      %p152 = scmp.ne.s32.totalorder %s144, %s146
      %p153 = scmp.eq.s32.totalorder %s26, 3
      %p154 = por %p152, %p153
      %p155 = scmp.ne.s32.totalorder %s146, %s147
      %p156 = scmp.eq.s32.totalorder %s26, 0
      %p157 = por %p155, %p156
      %p158 = scmp.ne.s32.totalorder %s146, %s147
      %p159 = scmp.eq.s32.totalorder %s27, 3
      %p160 = por %p158, %p159
      %p162 = scmp.ne.s32.totalorder %s147, %s161
      %p163 = scmp.eq.s32.totalorder %s27, 0
      %p164 = por %p162, %p163
      %s166 = sadd.s32 %s165, 1
      %p169 = scmp.eq.s32.totalorder %s21, 3
      %p170 = scmp.ne.s32.totalorder %s165, %s167
      %p171 = scmp.eq.s32.totalorder %s21, 0
      %p172 = por %p170, %p171
      %p173 = scmp.ne.s32.totalorder %s165, %s167
      %p174 = scmp.eq.s32.totalorder %s26, 3
      %p175 = por %p173, %p174
      %p176 = scmp.ne.s32.totalorder %s167, %s168
      %p177 = scmp.eq.s32.totalorder %s26, 0
      %p178 = por %p176, %p177
      %p179 = scmp.ne.s32.totalorder %s167, %s168
      %p180 = scmp.eq.s32.totalorder %s27, 3
      %p181 = por %p179, %p180
      %p183 = scmp.ne.s32.totalorder %s168, %s182
      %p184 = scmp.eq.s32.totalorder %s27, 0
      %p185 = por %p183, %p184
      %s187 = sadd.s32 %s186, 1
      %p190 = scmp.eq.s32.totalorder %s21, 3
      %p191 = scmp.ne.s32.totalorder %s186, %s188
      %p192 = scmp.eq.s32.totalorder %s21, 0
      %p193 = por %p191, %p192
      %p194 = scmp.ne.s32.totalorder %s186, %s188
      %p195 = scmp.eq.s32.totalorder %s26, 3
      %p196 = por %p194, %p195
      %p197 = scmp.ne.s32.totalorder %s188, %s189
      %p198 = scmp.eq.s32.totalorder %s26, 0
      %p199 = por %p197, %p198
      %p200 = scmp.ne.s32.totalorder %s188, %s189
      %p201 = scmp.eq.s32.totalorder %s27, 3
      %p202 = por %p200, %p201
      %p204 = scmp.ne.s32.totalorder %s189, %s203
      %p205 = scmp.eq.s32.totalorder %s27, 0
      %p206 = por %p204, %p205
      %s208 = sadd.s32 %s207, 1
      %p211 = scmp.eq.s32.totalorder %s21, 3
      %p212 = scmp.ne.s32.totalorder %s207, %s209
      %p213 = scmp.eq.s32.totalorder %s21, 0
      %p214 = por %p212, %p213
      %p215 = scmp.ne.s32.totalorder %s207, %s209
      %p216 = scmp.eq.s32.totalorder %s26, 3
      %p217 = por %p215, %p216
      %p218 = scmp.ne.s32.totalorder %s209, %s210
      %p219 = scmp.eq.s32.totalorder %s26, 0
      %p220 = por %p218, %p219
      %p221 = scmp.ne.s32.totalorder %s209, %s210
      %p222 = scmp.eq.s32.totalorder %s27, 3
      %p223 = por %p221, %p222
      %p225 = scmp.ne.s32.totalorder %s210, %s224
      %p226 = scmp.eq.s32.totalorder %s27, 0
      %p227 = por %p225, %p226
      %p228 = scmp.le.s32.totalorder 1, %s21
      %p229 = scmp.lt.s32.totalorder %s21, 5
      %p230 = pnand %p228, %p229
      %p231 = pneg %p230
      // Predicated region
      $region9: #{tpu_custom_call.1} parent=5 // pred_check
        _
      $region10: #{tpu_custom_call.1} parent=5 // pred_check_branch
        %233 = sbr.rel (%p230) target = $region12
      $region11: #{tpu_custom_call.1} parent=5 // pred_region
        %s234 = ssub.s32 %s21, 1
        // Predicated region
        $region13: #{tpu_custom_call.1} parent=11 // pred_check
          %p235 = pneg %p68
        $region14: #{tpu_custom_call.1} parent=11 // pred_check_branch
          %237 = sbr.rel (%p235) target = $region16
        $region15: #{tpu_custom_call.1} parent=11 // pred_region
          %s239 = ssub.s32 128, 128
          %240 = vsyncadd [#allocation7], %s239
          %s241 = sshll.u32 [#allocation6], 4
          %s242 = int_to_ptr.vmem [resolvable:$true] %s241
          %247 = dma.hbm_to_vmem [thread:$0]  %s1, 128, %s242, [#allocation7], 64, 64, 4
        $region16: #{tpu_custom_call.1} parent=11 // pred_fallthru
          _
        // Predicated region
        $region17: #{tpu_custom_call.1} parent=11 // pred_check
          %p248 = pneg %p115
        $region18: #{tpu_custom_call.1} parent=11 // pred_check_branch
          %250 = sbr.rel (%p248) target = $region20
        $region19: #{tpu_custom_call.1} parent=11 // pred_region
          _
        $region20: #{tpu_custom_call.1} parent=11 // pred_fallthru
          _
        // Predicated region
        $region21: #{tpu_custom_call.1} parent=11 // pred_check
          %p251 = pneg %p136
        $region22: #{tpu_custom_call.1} parent=11 // pred_check_branch
          %253 = sbr.rel (%p251) target = $region24
        $region23: #{tpu_custom_call.1} parent=11 // pred_region
          %s255 = ssub.s32 256, 256
          %256 = vsyncadd [#allocation7], %s255
          %s257 = sshll.u32 [#allocation9], 4
          %s258 = int_to_ptr.vmem [resolvable:$true] %s257
          %263 = dma.hbm_to_vmem [thread:$0]  %s4, 256, %s258, [#allocation7], 64, 64, 4
        $region24: #{tpu_custom_call.1} parent=11 // pred_fallthru
          _
        // Predicated region
        $region25: #{tpu_custom_call.1} parent=11 // pred_check
          %p264 = pneg %p157
        $region26: #{tpu_custom_call.1} parent=11 // pred_check_branch
          %266 = sbr.rel (%p264) target = $region28
        $region27: #{tpu_custom_call.1} parent=11 // pred_region
          _
        $region28: #{tpu_custom_call.1} parent=11 // pred_fallthru
          _
      $region12: #{tpu_custom_call.1} parent=5 // pred_fallthru
        _
      %p267 = scmp.lt.s32.totalorder %s21, 4
      // Predicated region
      $region29: #{tpu_custom_call.1} parent=5 // pred_check
        %p268 = pneg %p267
      $region30: #{tpu_custom_call.1} parent=5 // pred_check_branch
        %270 = sbr.rel (%p268) target = $region32
      $region31: #{tpu_custom_call.1} parent=5 // pred_region
        // Predicated region
        $region33: #{tpu_custom_call.1} parent=31 // pred_check
          %p271 = pneg %p41
        $region34: #{tpu_custom_call.1} parent=31 // pred_check_branch
          %273 = sbr.rel (%p271) target = $region36
        $region35: #{tpu_custom_call.1} parent=31 // pred_region
          %s274 = sand.u32 %s21, 1
          %s275 = scalar_lea.sflag [#allocation4], %s274
          %s276 = sand.u32 %s31, 1
          %s277 = smul.addr %s276, 8
          %s278 = scalar_lea.vmem [#allocation3], %s277
          %s279 = smul.u32 2, %s21
          %s281 = ssub.s32 128, 128
          %282 = vsyncadd %s275, %s281
          %s283 = smul.addr %s279, 64
          %s284 = scalar_lea.hbm %s0, %s283
          %s286 = sshll.u32 %s278, 4
          %s287 = int_to_ptr.vmem [resolvable:$true] %s286
          %289 = dma.hbm_to_vmem [thread:$0]  %s284, 128, %s287, %s275
        $region36: #{tpu_custom_call.1} parent=31 // pred_fallthru
          _
        // Predicated region
        $region37: #{tpu_custom_call.1} parent=31 // pred_check
          %p290 = pneg %p88
        $region38: #{tpu_custom_call.1} parent=31 // pred_check_branch
          %292 = sbr.rel (%p290) target = $region40
        $region39: #{tpu_custom_call.1} parent=31 // pred_region
          %s293 = sand.u32 %s21, 1
          %s294 = scalar_lea.sflag [#allocation4], %s293
          %s295 = sand.u32 %s78, 1
          %s296 = smul.addr %s295, 128
          %s297 = scalar_lea.vmem [#allocation8], %s296
          %s298 = smul.u32 32, %s21
          %s300 = ssub.s32 2048, 2048
          %301 = vsyncadd %s294, %s300
          %s302 = smul.addr %s298, 64
          %s303 = scalar_lea.hbm %s2, %s302
          %s304 = sshll.u32 %s297, 4
          %s305 = int_to_ptr.vmem [resolvable:$true] %s304
          %310 = dma.hbm_to_vmem [thread:$0]  %s303, 2048, %s305, %s294, 64, 64, 4
        $region40: #{tpu_custom_call.1} parent=31 // pred_fallthru
          _
      $region32: #{tpu_custom_call.1} parent=5 // pred_fallthru
        _
      %p311 = scmp.le.s32.totalorder 1, %s21
      %p312 = scmp.lt.s32.totalorder %s21, 5
      %p313 = pnand %p311, %p312
      %p314 = pneg %p313
      // Predicated region
      $region41: #{tpu_custom_call.1} parent=5 // pred_check
        _
      $region42: #{tpu_custom_call.1} parent=5 // pred_check_branch
        %316 = sbr.rel (%p313) target = $region44
      $region43: #{tpu_custom_call.1} parent=5 // pred_region
        %s317 = ssub.s32 %s21, 1
        %s318 = sand.u32 %s26, 1
        %s319 = scalar_lea.sflag [#allocation4], %s318
        %s320 = sand.u32 %s34, 1
        %s321 = smul.addr %s320, 8
        %s322 = scalar_lea.vmem [#allocation3], %s321
        // Predicated region
        $region45: #{tpu_custom_call.1} parent=43 // pred_check
          %p323 = pneg %p47
        $region46: #{tpu_custom_call.1} parent=43 // pred_check_branch
          %325 = sbr.rel (%p323) target = $region48
        $region47: #{tpu_custom_call.1} parent=43 // pred_region
          %326 = dma.done %s319, 128
        $region48: #{tpu_custom_call.1} parent=43 // pred_fallthru
          _
        // Predicated region
        $region49: #{tpu_custom_call.1} parent=43 // pred_check
          %p327 = pneg %p68
        $region50: #{tpu_custom_call.1} parent=43 // pred_check_branch
          %329 = sbr.rel (%p327) target = $region52
        $region51: #{tpu_custom_call.1} parent=43 // pred_region
          %330 = dma.done [#allocation7], 128
        $region52: #{tpu_custom_call.1} parent=43 // pred_fallthru
          _
        %s331 = sand.u32 %s26, 1
        %s332 = scalar_lea.sflag [#allocation4], %s331
        %s333 = sand.u32 %s81, 1
        %s334 = smul.addr %s333, 128
        %s335 = scalar_lea.vmem [#allocation8], %s334
        // Predicated region
        $region53: #{tpu_custom_call.1} parent=43 // pred_check
          %p336 = pneg %p94
        $region54: #{tpu_custom_call.1} parent=43 // pred_check_branch
          %338 = sbr.rel (%p336) target = $region56
        $region55: #{tpu_custom_call.1} parent=43 // pred_region
          %339 = dma.done %s332, 2048
        $region56: #{tpu_custom_call.1} parent=43 // pred_fallthru
          _
        // Predicated region
        $region57: #{tpu_custom_call.1} parent=43 // pred_check
          %p340 = pneg %p136
        $region58: #{tpu_custom_call.1} parent=43 // pred_check_branch
          %342 = sbr.rel (%p340) target = $region60
        $region59: #{tpu_custom_call.1} parent=43 // pred_region
          %343 = dma.done [#allocation7], 256
        $region60: #{tpu_custom_call.1} parent=43 // pred_fallthru
          _
        %s344 = sand.u32 %s26, 1
        %s345 = scalar_lea.sflag [#allocation4], %s344
        %s346 = sand.u32 %s34, 1
        %s347 = smul.addr %s346, 8
        %s348 = scalar_lea.vmem [#allocation3], %s347
        %p349 = pneg %p47
        %p350 = pneg %p44
        %p351 = pneg %p68
        %p352 = pneg %p65
        %s353 = sand.u32 %s26, 1
        %s354 = scalar_lea.sflag [#allocation4], %s353
        %s355 = sand.u32 %s81, 1
        %s356 = smul.addr %s355, 128
        %s357 = scalar_lea.vmem [#allocation8], %s356
        %p358 = pneg %p94
        %p359 = pneg %p91
        %p360 = pneg %p115
        %p361 = pneg %p112
        %p362 = pneg %p136
        %p363 = pneg %p133
        %p364 = pneg %p157
        %p365 = pneg %p154
        %p366 = pneg %p178
        %p367 = pneg %p175
        %p368 = pneg %p199
        %p369 = pneg %p196
        %p370 = pneg %p220
        %p371 = pneg %p217
        %s372 = smul.u32 2, %s26
        %s373 = smul.u32 32, %s26
        %p375 = scmp.eq.s32.totalorder %s26, 0
        // Predicated region
        $region61: #{tpu_custom_call.1} parent=43 // pred_check
          %p376 = pneg %p375
        $region62: #{tpu_custom_call.1} parent=43 // pred_check_branch
          %378 = sbr.rel (%p376) target = $region64
        $region63: #{tpu_custom_call.1} parent=43 // pred_region
          %379 = vst [vmem:[#allocation2] sm:$0xff] 0.0
          %v380 = vld [vmem:[#allocation6] sm:$0xf]
          %v381 = vld [vmem:[#allocation6 + $0x4] sm:$0xf]
          %v382 = vld [vmem:[#allocation9] sm:$0xf]
          %v383 = vld [vmem:[#allocation9 + $0x4] sm:$0xf]
          %v384 = vld [vmem:[#allocation9 + $0x8] sm:$0xf]
          %v385 = vld [vmem:[#allocation9 + $0xc] sm:$0xf]
          %v386 = vld [vmem:[%s5] sm:$0x1]
          %v388 = vlaneseq
          %v389 = vshrl.u32 %v388, 7
          %v390 = vsub.s32 0, %v389
          %v391 = vrot.slane %v386, %v390
          %v395 = vunpack.c.l.b16 %v380
          %v396 = vunpack.c.l.b16 %v381
          %v397 = vpack.c.b16 %v396, %v395
          %v402 = vunpack.c.l.b16 %v382
          %v403 = vunpack.c.l.b16 %v383
          %v404 = vunpack.c.l.b16 %v384
          %v405 = vunpack.c.l.b16 %v385
          %v406 = vpack.c.b16 %v403, %v402
          %v407 = vpack.c.b16 %v405, %v404
          %vm410 = vcmask 261120
          %v412 = vsel %vm410, %v397, 0
          %414 = vmatprep.subr.bf16.mxu0 0
          %415 = vmatpush1.bf16.msra.mxu0 %v406
          %416 = vmatprep.subr.bf16.mxu0 0
          %417 = vmatpush1.bf16.msra.mxu0 %v407
          %418 = vmatprep.subr.bf16.mxu0 0
          %419 = vmatpush1.bf16.msra.mxu0 0
          %420 = vmatprep.subr.bf16.mxu0 0
          %421 = vmatpush1.bf16.msra.mxu0 0
          %422 = vmatprep.subr.bf16.mxu0 0
          %423 = vmatpush1.bf16.msra.mxu0 0
          %424 = vmatprep.subr.bf16.mxu0 0
          %425 = vmatpush1.bf16.msra.mxu0 0
          %426 = vmatprep.subr.bf16.mxu0 0
          %427 = vmatpush1.bf16.msra.mxu0 0
          %428 = vmatprep.subr.bf16.mxu0 0
          %429 = vmatpush1.bf16.msra.mxu0 0
          %430 = vmatprep.subr.bf16.mxu0 0
          %431 = vmatpush1.bf16.msra.mxu0 0
          %432 = vmatprep.subr.bf16.mxu0 0
          %433 = vmatpush1.bf16.msra.mxu0 0
          %434 = vmatprep.subr.bf16.mxu0 0
          %435 = vmatpush1.bf16.msra.mxu0 0
          %436 = vmatprep.subr.bf16.mxu0 0
          %437 = vmatpush1.bf16.msra.mxu0 0
          %438 = vmatprep.subr.bf16.mxu0 0
          %439 = vmatpush1.bf16.msra.mxu0 0
          %440 = vmatprep.subr.bf16.mxu0 0
          %441 = vmatpush1.bf16.msra.mxu0 0
          %442 = vmatprep.subr.bf16.mxu0 0
          %443 = vmatpush1.bf16.msra.mxu0 0
          %444 = vmatprep.subr.bf16.mxu0 0
          %445 = vmatpush1.bf16.msra.mxu0 0
          %446 = vmatprep.mubr.bf16.mxu0 0
          %447 = vmatmul.mubr.bf16.gmra.mrb[0].mxu0 %v412
          %v448 = vpop.f32.mrb[0].mxu0
          %v449 = vadd.f32 %v391, %v448
          %v450 = vpop.f32.mrb[0].mxu0
          %v451 = vpop.f32.mrb[0].mxu0
          %v452 = vadd.f32 %v391, %v451
          %v453 = vpop.f32.mrb[0].mxu0
          %454 = vdwg.mxu0
          %v455 = vmax.f32 %v449, 0.0
          %v456 = vmax.f32 %v452, 0.0
          %457 = vst [vmem:[#allocation11] sm:$0xff] %v455
          %458 = vst [vmem:[#allocation11 + $0x8] sm:$0xff] %v456
        $region64: #{tpu_custom_call.1} parent=43 // pred_fallthru
          _
        %v459 = vld [vmem:[#allocation2] sm:$0xff]
        %v460 = vld [vmem:[%s322] sm:$0xff]
        %v461 = vld [vmem:[%s335] sm:$0xf]
        %v462 = vld [vmem:[%s335 + $0x4] sm:$0xf]
        %v463 = vld [vmem:[%s335 + $0x8] sm:$0xf]
        %v464 = vld [vmem:[%s335 + $0xc] sm:$0xf]
        %v465 = vld [vmem:[%s335 + $0x10] sm:$0xf]
        %v466 = vld [vmem:[%s335 + $0x14] sm:$0xf]
        %v467 = vld [vmem:[%s335 + $0x18] sm:$0xf]
        %v468 = vld [vmem:[%s335 + $0x1c] sm:$0xf]
        %v469 = vld [vmem:[%s335 + $0x20] sm:$0xf]
        %v470 = vld [vmem:[%s335 + $0x24] sm:$0xf]
        %v471 = vld [vmem:[%s335 + $0x28] sm:$0xf]
        %v472 = vld [vmem:[%s335 + $0x2c] sm:$0xf]
        %v473 = vld [vmem:[%s335 + $0x30] sm:$0xf]
        %v474 = vld [vmem:[%s335 + $0x34] sm:$0xf]
        %v475 = vld [vmem:[%s335 + $0x38] sm:$0xf]
        %v476 = vld [vmem:[%s335 + $0x3c] sm:$0xf]
        %v477 = vld [vmem:[%s335 + $0x40] sm:$0xf]
        %v478 = vld [vmem:[%s335 + $0x44] sm:$0xf]
        %v479 = vld [vmem:[%s335 + $0x48] sm:$0xf]
        %v480 = vld [vmem:[%s335 + $0x4c] sm:$0xf]
        %v481 = vld [vmem:[%s335 + $0x50] sm:$0xf]
        %v482 = vld [vmem:[%s335 + $0x54] sm:$0xf]
        %v483 = vld [vmem:[%s335 + $0x58] sm:$0xf]
        %v484 = vld [vmem:[%s335 + $0x5c] sm:$0xf]
        %v485 = vld [vmem:[%s335 + $0x60] sm:$0xf]
        %v486 = vld [vmem:[%s335 + $0x64] sm:$0xf]
        %v487 = vld [vmem:[%s335 + $0x68] sm:$0xf]
        %v488 = vld [vmem:[%s335 + $0x6c] sm:$0xf]
        %v489 = vld [vmem:[%s335 + $0x70] sm:$0xf]
        %v490 = vld [vmem:[%s335 + $0x74] sm:$0xf]
        %v491 = vld [vmem:[%s335 + $0x78] sm:$0xf]
        %v492 = vld [vmem:[%s335 + $0x7c] sm:$0xf]
        %v494 = vunpack.c.l.b16 %v460
        %v495 = vunpack.c.h.b16 %v460
        %v496 = vpack.c.b16 %v494, %v494
        %v497 = vpack.c.b16 %v495, %v495
        %v532 = vunpack.c.l.b16 %v461
        %v533 = vunpack.c.l.b16 %v462
        %v534 = vunpack.c.l.b16 %v463
        %v535 = vunpack.c.l.b16 %v464
        %v536 = vunpack.c.l.b16 %v465
        %v537 = vunpack.c.l.b16 %v466
        %v538 = vunpack.c.l.b16 %v467
        %v539 = vunpack.c.l.b16 %v468
        %v540 = vunpack.c.l.b16 %v469
        %v541 = vunpack.c.l.b16 %v470
        %v542 = vunpack.c.l.b16 %v471
        %v543 = vunpack.c.l.b16 %v472
        %v544 = vunpack.c.l.b16 %v473
        %v545 = vunpack.c.l.b16 %v474
        %v546 = vunpack.c.l.b16 %v475
        %v547 = vunpack.c.l.b16 %v476
        %v548 = vunpack.c.l.b16 %v477
        %v549 = vunpack.c.l.b16 %v478
        %v550 = vunpack.c.l.b16 %v479
        %v551 = vunpack.c.l.b16 %v480
        %v552 = vunpack.c.l.b16 %v481
        %v553 = vunpack.c.l.b16 %v482
        %v554 = vunpack.c.l.b16 %v483
        %v555 = vunpack.c.l.b16 %v484
        %v556 = vunpack.c.l.b16 %v485
        %v557 = vunpack.c.l.b16 %v486
        %v558 = vunpack.c.l.b16 %v487
        %v559 = vunpack.c.l.b16 %v488
        %v560 = vunpack.c.l.b16 %v489
        %v561 = vunpack.c.l.b16 %v490
        %v562 = vunpack.c.l.b16 %v491
        %v563 = vunpack.c.l.b16 %v492
        %v564 = vpack.c.b16 %v533, %v532
        %v565 = vpack.c.b16 %v535, %v534
        %v566 = vpack.c.b16 %v537, %v536
        %v567 = vpack.c.b16 %v539, %v538
        %v568 = vpack.c.b16 %v541, %v540
        %v569 = vpack.c.b16 %v543, %v542
        %v570 = vpack.c.b16 %v545, %v544
        %v571 = vpack.c.b16 %v547, %v546
        %v572 = vpack.c.b16 %v549, %v548
        %v573 = vpack.c.b16 %v551, %v550
        %v574 = vpack.c.b16 %v553, %v552
        %v575 = vpack.c.b16 %v555, %v554
        %v576 = vpack.c.b16 %v557, %v556
        %v577 = vpack.c.b16 %v559, %v558
        %v578 = vpack.c.b16 %v561, %v560
        %v579 = vpack.c.b16 %v563, %v562
        %596 = vmatprep.subr.bf16.mxu0 0
        %597 = vmatpush1.bf16.msra.mxu0 %v564
        %598 = vmatprep.subr.bf16.mxu0 0
        %599 = vmatpush1.bf16.msra.mxu0 %v565
        %600 = vmatprep.subr.bf16.mxu0 0
        %601 = vmatpush1.bf16.msra.mxu0 %v566
        %602 = vmatprep.subr.bf16.mxu0 0
        %603 = vmatpush1.bf16.msra.mxu0 %v567
        %604 = vmatprep.subr.bf16.mxu0 0
        %605 = vmatpush1.bf16.msra.mxu0 %v568
        %606 = vmatprep.subr.bf16.mxu0 0
        %607 = vmatpush1.bf16.msra.mxu0 %v569
        %608 = vmatprep.subr.bf16.mxu0 0
        %609 = vmatpush1.bf16.msra.mxu0 %v570
        %610 = vmatprep.subr.bf16.mxu0 0
        %611 = vmatpush1.bf16.msra.mxu0 %v571
        %612 = vmatprep.subr.bf16.mxu0 0
        %613 = vmatpush1.bf16.msra.mxu0 %v572
        %614 = vmatprep.subr.bf16.mxu0 0
        %615 = vmatpush1.bf16.msra.mxu0 %v573
        %616 = vmatprep.subr.bf16.mxu0 0
        %617 = vmatpush1.bf16.msra.mxu0 %v574
        %618 = vmatprep.subr.bf16.mxu0 0
        %619 = vmatpush1.bf16.msra.mxu0 %v575
        %620 = vmatprep.subr.bf16.mxu0 0
        %621 = vmatpush1.bf16.msra.mxu0 %v576
        %622 = vmatprep.subr.bf16.mxu0 0
        %623 = vmatpush1.bf16.msra.mxu0 %v577
        %624 = vmatprep.subr.bf16.mxu0 0
        %625 = vmatpush1.bf16.msra.mxu0 %v578
        %626 = vmatprep.subr.bf16.mxu0 0
        %627 = vmatpush1.bf16.msra.mxu0 %v579
        %628 = vmatprep.mubr.bf16.mxu0 %v497
        %629 = vmatmul.mubr.bf16.gmra.mrb[0].mxu0 %v496
        %v630 = vpop.f32.mrb[0].mxu0
        %v631 = vadd.f32 0.0, %v630
        %v632 = vpop.f32.mrb[0].mxu0
        %v633 = vpop.f32.mrb[0].mxu0
        %v634 = vpop.f32.mrb[0].mxu0
        %635 = vdwg.mxu0
        %v636 = vadd.f32 %v459, %v631
        %637 = vst [vmem:[#allocation2] sm:$0xff] %v636
        %p638 = scmp.eq.s32.totalorder %s26, 3
        // Predicated region
        $region65: #{tpu_custom_call.1} parent=43 // pred_check
          %p639 = pneg %p638
        $region66: #{tpu_custom_call.1} parent=43 // pred_check_branch
          %641 = sbr.rel (%p639) target = $region68
        $region67: #{tpu_custom_call.1} parent=43 // pred_region
          %v642 = vld [vmem:[#allocation2] sm:$0xff]
          %v643 = vld [vmem:[%s3] sm:$0x1]
          %v645 = vlaneseq
          %v646 = vshrl.u32 %v645, 7
          %v647 = vsub.s32 0, %v646
          %v648 = vrot.slane %v643, %v647
          %v650 = vadd.f32 %v642, %v648
          %v651 = vmax.f32 %v650, 0.0
          %652 = vst [vmem:[#allocation10] sm:$0xff] %v651
          %v653 = vld [vmem:[#allocation11] sm:$0xff]
          %v654 = vld [vmem:[#allocation11 + $0x8] sm:$0xff]
          %v655 = vmul.f32 %v651, %v651
          %656 = vadd.xlane.f32.xlu0 %v655
          %v657 = vpop.xlane.xlu0 %656
          %v658 = vadd.f32 %v657, 1e-08
          %v659 = vrsqrt.pop %v658
          %v660 = vmul.f32 %v653, %v653
          %661 = vadd.xlane.f32.xlu0 %v660
          %v662 = vpop.xlane.xlu0 %661
          %v663 = vadd.f32 %v662, 1e-08
          %v664 = vrsqrt.pop %v663
          %v665 = vmul.f32 %v654, %v654
          %666 = vadd.xlane.f32.xlu0 %v665
          %v667 = vpop.xlane.xlu0 %666
          %v668 = vadd.f32 %v667, 1e-08
          %v669 = vrsqrt.pop %v668
          %v670 = vmul.f32 %v651, %v653
          %671 = vadd.xlane.f32.xlu0 %v670
          %v672 = vpop.xlane.xlu0 %671
          %v673 = vmul.f32 %v659, %v664
          %v674 = vmul.f32 %v672, %v673
          %v675 = vmul.f32 %v651, %v654
          %676 = vadd.xlane.f32.xlu0 %v675
          %v677 = vpop.xlane.xlu0 %676
          %v678 = vmul.f32 %v659, %v669
          %v679 = vmul.f32 %v677, %v678
          %v680 = vlaneseq
          %v681 = vand.u32 %v680, 127
          %vm682 = vcmp.eq.s32.totalorder %v681, 0
          %v683 = vsel %vm682, %v674, %v679
          %vm684 = vcmask 15360
          %685 = vst.msk [vmem:[%s8] sm:$0xff] %vm684, %v683
        $region68: #{tpu_custom_call.1} parent=43 // pred_fallthru
          _
        // Predicated region
        $region69: #{tpu_custom_call.1} parent=43 // pred_check
          %p686 = pneg %p175
        $region70: #{tpu_custom_call.1} parent=43 // pred_check_branch
          %688 = sbr.rel (%p686) target = $region72
        $region71: #{tpu_custom_call.1} parent=43 // pred_region
          %s690 = ssub.s32 128, 128
          %691 = vsyncadd [#allocation5], %s690
          %s693 = sshll.u32 [#allocation10], 4
          %s694 = int_to_ptr.vmem [resolvable:$true] %s693
          %696 = dma.vmem_to_hbm [thread:$0]  %s694, 128, %s6, [#allocation5]
        $region72: #{tpu_custom_call.1} parent=43 // pred_fallthru
          _
        // Predicated region
        $region73: #{tpu_custom_call.1} parent=43 // pred_check
          %p697 = pneg %p196
        $region74: #{tpu_custom_call.1} parent=43 // pred_check_branch
          %699 = sbr.rel (%p697) target = $region76
        $region75: #{tpu_custom_call.1} parent=43 // pred_region
          %s701 = ssub.s32 256, 256
          %702 = vsyncadd [#allocation12], %s701
          %s703 = sshll.u32 [#allocation11], 4
          %s704 = int_to_ptr.vmem [resolvable:$true] %s703
          %709 = dma.vmem_to_hbm [thread:$0]  %s704, 256, %s7, [#allocation12], 128, 128, 8
        $region76: #{tpu_custom_call.1} parent=43 // pred_fallthru
          _
        // Predicated region
        $region77: #{tpu_custom_call.1} parent=43 // pred_check
          %p710 = pneg %p217
        $region78: #{tpu_custom_call.1} parent=43 // pred_check_branch
          %712 = sbr.rel (%p710) target = $region80
        $region79: #{tpu_custom_call.1} parent=43 // pred_region
          _
        $region80: #{tpu_custom_call.1} parent=43 // pred_fallthru
          _
        // Predicated region
        $region81: #{tpu_custom_call.1} parent=43 // pred_check
          %p713 = pneg %p175
        $region82: #{tpu_custom_call.1} parent=43 // pred_check_branch
          %715 = sbr.rel (%p713) target = $region84
        $region83: #{tpu_custom_call.1} parent=43 // pred_region
          %716 = dma.done [#allocation5], 128
        $region84: #{tpu_custom_call.1} parent=43 // pred_fallthru
          _
        // Predicated region
        $region85: #{tpu_custom_call.1} parent=43 // pred_check
          %p717 = pneg %p196
        $region86: #{tpu_custom_call.1} parent=43 // pred_check_branch
          %719 = sbr.rel (%p717) target = $region88
        $region87: #{tpu_custom_call.1} parent=43 // pred_region
          %720 = dma.done [#allocation12], 256
        $region88: #{tpu_custom_call.1} parent=43 // pred_fallthru
          _
        // Predicated region
        $region89: #{tpu_custom_call.1} parent=43 // pred_check
          %p721 = pneg %p217
        $region90: #{tpu_custom_call.1} parent=43 // pred_check_branch
          %723 = sbr.rel (%p721) target = $region92
        $region91: #{tpu_custom_call.1} parent=43 // pred_region
          _
        $region92: #{tpu_custom_call.1} parent=43 // pred_fallthru
          _
      $region44: #{tpu_custom_call.1} parent=5 // pred_fallthru
        _
      %p724 = scmp.le.s32.totalorder 2, %s21
      // Predicated region
      $region93: #{tpu_custom_call.1} parent=5 // pred_check
        %p725 = pneg %p724
      $region94: #{tpu_custom_call.1} parent=5 // pred_check_branch
        %727 = sbr.rel (%p725) target = $region96
      $region95: #{tpu_custom_call.1} parent=5 // pred_region
        %s728 = ssub.s32 %s21, 2
      $region96: #{tpu_custom_call.1} parent=5 // pred_fallthru
        _
    $region6: #{tpu_custom_call.1} parent=1 // loop_footer
      %s25 = sadd.s32 1, %s21
    $region7: #{tpu_custom_call.1} parent=1 // loop_footer_branch
      %20 = sbr.rel target = $region3
    $region8: #{tpu_custom_call.1} parent=1 // loop_exit
      _
    %729 = vsyncpa [#allocation4], 1
    %s730 = scalar_lea.sflag [#allocation4], 1
    %731 = vsyncpa %s730, 1
    %732 = vsyncpa [#allocation7], 1
    %733 = vsyncpa [#allocation5], 1
    %s734 = scalar_lea.sflag [#allocation5], 1
    %735 = vsyncpa %s734, 1
    %736 = vsyncpa [#allocation12], 1

</llo_original>
